<compile_context>
chip_gen: v5e
topology: v5e:2x2
jax: 0.10.0
libtpu: 0.0.40
codegen_flags: <defaults>
</compile_context>

<pallas_src>
import functools

import jax
import jax.numpy as jnp
from jax.experimental import pallas as pl
from jax.experimental.pallas import tpu as pltpu

_LANE = 128
_MIN_PALLAS_BYTES = 512 * 1024  # below this, fused XLA is strictly better


def _round_up(x, m):
    return ((x + m - 1) // m) * m


def _default_block_bytes():
    """Per-generation tile-size target (bytes per input block)."""
    try:
        kind = jax.devices()[0].device_kind.lower()
    except Exception:  # pragma: no cover - be permissive about backends
        kind = ""
    if "v5" in kind:
        # v5e: 16 MiB scoped-VMEM default -> 2 MiB tiles (8 MiB double buffered).
        return 2 * 1024 * 1024
    # v6e / v7x: 4 MiB tiles -> 16 MiB double buffered (in+out), under the
    # 32 MiB scoped-VMEM default on both.
    return 4 * 1024 * 1024


def _dorefa_a_math(x, nbit, alpha):
    """The quantizer math, in f32.  Shared by kernel, fallback and reference."""
    x = jnp.clip(x, 0.0, 1.0)
    if nbit != 32:
        levels = float(2 ** nbit - 1)
        scale = levels if alpha is None else levels / float(alpha)
        # true divide (not reciprocal-multiply) to stay bit-exact with torch
        x = jnp.round(scale * x) / scale
    return x


def _dorefa_a_kernel(x_ref, o_ref, *, nbit, alpha):
    # Read original dtype, compute in f32, store back original dtype.
    x = x_ref[...].astype(jnp.float32)
    o_ref[...] = _dorefa_a_math(x, nbit, alpha).astype(o_ref.dtype)


def _dorefa_a_xla(inp, nbit_a, alpha):
    """Fused-XLA fallback: one HBM pass, used for small / odd-size tensors."""
    x = _dorefa_a_math(inp.astype(jnp.float32), nbit_a, alpha)
    return x.astype(inp.dtype)


def dorefa_a(inp, nbit_a, alpha=None, *, block_bytes=None,
             min_pallas_bytes=_MIN_PALLAS_BYTES):
    """Forward pass of DoReFaA: quantize(clamp(inp, 0, 1), nbit_a, alpha)."""
    nbit_a = int(nbit_a)

    # nbit == 32 is identity quantization -> just the clamp; let XLA fuse it.
    if nbit_a == 32:
        return jnp.clip(inp, 0, 1)

    dtype = jnp.dtype(inp.dtype)
    itemsize = dtype.itemsize
    n = inp.size

    # Fallback to the fused XLA expression when Pallas would only add overhead
    # or extra HBM passes:
    #  * empty / tiny tensors (launch + pipeline prologue dominates),
    #  * flat size not a multiple of 128 lanes (would need pad + slice = 2
    #    extra full HBM passes),
    #  * exotic sub-16-bit dtypes (tile-granularity constraints).
    if (n == 0
            or n * itemsize < min_pallas_bytes
            or n % _LANE != 0
            or itemsize < 2):
        return _dorefa_a_xla(inp, nbit_a, alpha)

    orig_shape = inp.shape
    x2 = inp.reshape(-1, _LANE)          # lane-dense slab, no padding needed
    rows = x2.shape[0]

    # Sublane granularity per dtype width.
    sub = {2: 16, 4: 8}.get(itemsize, 8)

    # Constant-byte blocks: same DMA size for f32 and bf16.
    if block_bytes is None:
        block_bytes = _default_block_bytes()
    br = max(sub, int(block_bytes) // (_LANE * itemsize))
    br = min(br, _round_up(rows, sub))
    br = _round_up(br, sub)

    # If everything fits in one block but there is enough work to split, use
    # two balanced blocks so both TensorCores are busy on v7x.
    if rows > 2 * sub and (rows + br - 1) // br == 1:
        br = _round_up((rows + 1) // 2, sub)

    grid = (pl.cdiv(rows, br),)

    kernel = functools.partial(
        _dorefa_a_kernel,
        nbit=nbit_a,
        alpha=None if alpha is None else float(alpha),
    )

    # Advisory cost hint: ~5 elementwise ops/elem, read + write of the tensor.
    cost = pl.CostEstimate(
        flops=5 * n,
        transcendentals=0,
        bytes_accessed=2 * n * itemsize,
    )

    # NOTE: input_output_aliases={0: 0} would let callers donate the activation
    # buffer (saves an HBM allocation, not bandwidth); left off so undonated
    # inputs don't force an XLA copy.
    out2 = pl.pallas_call(
        kernel,
        out_shape=jax.ShapeDtypeStruct((rows, _LANE), dtype),
        grid_spec=pltpu.PrefetchScalarGridSpec(
            num_scalar_prefetch=0,
            grid=grid,
            in_specs=[pl.BlockSpec((br, _LANE), lambda i: (i, 0))],
            out_specs=pl.BlockSpec((br, _LANE), lambda i: (i, 0)),
        ),
        compiler_params=pltpu.CompilerParams(
            dimension_semantics=("parallel",)
        ),
        cost_estimate=cost,
    )(x2)

    return out2.reshape(orig_shape)


def _dorefa_a_ref(inp, nbit_a, alpha=None):
    x = _dorefa_a_math(inp.astype(jnp.float32), nbit_a, alpha)
    return x.astype(inp.dtype)


if __name__ == "__main__":
    key = jax.random.PRNGKey(0)
    k0, k1, k2 = jax.random.split(key, 3)

    ok = True

    def _check(y, y_ref, atol=1e-6, rtol=1e-6):
        return bool(jnp.allclose(y.astype(jnp.float32), y_ref.astype(jnp.float32),
                                 atol=atol, rtol=rtol))

    # Small NCHW activation tensor, values spilling outside [0, 1].
    # Default path uses the fused-XLA small-tensor fallback; also force the
    # Pallas path (min_pallas_bytes=0) for kernel coverage.
    x = jax.random.normal(k0, (2, 4, 16, 16), dtype=jnp.float32) * 1.5 + 0.25
    for nbit in (2, 4, 32):
        for force in (False, True):
            y = jax.block_until_ready(
                dorefa_a(x, nbit, min_pallas_bytes=0 if force else _MIN_PALLAS_BYTES))
            ok &= _check(y, _dorefa_a_ref(x, nbit))

    # alpha-scaled path (forward only).
    y = jax.block_until_ready(dorefa_a(x, 4, alpha=0.8, min_pallas_bytes=0))
    ok &= _check(y, _dorefa_a_ref(x, 4, alpha=0.8))

    # bf16 activations: in-kernel dtype handling, dtype-scaled block rows.
    x_bf16 = x.astype(jnp.bfloat16)
    y = jax.block_until_ready(dorefa_a(x_bf16, 4, min_pallas_bytes=0))
    ok &= _check(y, _dorefa_a_ref(x_bf16, 4), atol=1e-2, rtol=1e-2)

    # Medium tensor (2 MiB) that takes the Pallas path with default settings
    # and exercises the >=2-block split for TC balance.
    x_med = jax.random.normal(k1, (8, 16, 64, 64), dtype=jnp.float32) * 1.5 + 0.25
    y = jax.block_until_ready(dorefa_a(x_med, 4))
    ok &= _check(y, _dorefa_a_ref(x_med, 4))

    # Awkward size: flat size not a multiple of 128 -> fused-XLA fallback
    # (no pad/slice HBM passes).
    x_odd = jax.random.normal(k2, (3, 5, 7, 11), dtype=jnp.float32) * 1.5 + 0.25
    y = jax.block_until_ready(dorefa_a(x_odd, 4))
    ok &= _check(y, _dorefa_a_ref(x_odd, 4))

    if ok:
        print("KERNEL_OK")
    else:
        raise SystemExit("mismatch vs reference")
</pallas_src>

<mosaic_0001>
module attributes {stable_mosaic.version = 11 : i64} {
  func.func @_dorefa_a_kernel(%arg0: i32, %arg1: memref<16x128xf32, #tpu.memory_space<vmem>>, %arg2: memref<16x128xf32, #tpu.memory_space<vmem>>) attributes {dimension_semantics = [#tpu.dimension_semantics<parallel>], iteration_bounds = array<i64: 1>, scalar_prefetch = 0 : i64, scratch_operands = 0 : i64, tpu.core_type = #tpu.core_type<tc>, window_params = [{transform_indices = @transform_0, window_bounds = array<i64: 16, 128>}, {transform_indices = @transform_1, window_bounds = array<i64: 16, 128>}]} {
    %c0 = arith.constant 0 : index
    %c0_0 = arith.constant 0 : index
    %0 = vector.load %arg1[%c0, %c0_0] : memref<16x128xf32, #tpu.memory_space<vmem>>, vector<16x128xf32>
    %cst = arith.constant 0.000000e+00 : f32
    %cst_1 = arith.constant 1.000000e+00 : f32
    %1 = vector.broadcast %cst : f32 to vector<16x128xf32>
    %2 = arith.maximumf %1, %0 : vector<16x128xf32>
    %3 = vector.broadcast %cst_1 : f32 to vector<16x128xf32>
    %4 = arith.minimumf %3, %2 : vector<16x128xf32>
    %cst_2 = arith.constant 3.000000e+00 : f32
    %5 = vector.broadcast %cst_2 : f32 to vector<16x128xf32>
    %6 = arith.mulf %5, %4 : vector<16x128xf32>
    %7 = math.roundeven %6 : vector<16x128xf32>
    %cst_3 = arith.constant 3.000000e+00 : f32
    %8 = vector.broadcast %cst_3 : f32 to vector<16x128xf32>
    %9 = arith.divf %7, %8 : vector<16x128xf32>
    %c0_4 = arith.constant 0 : index
    %c0_5 = arith.constant 0 : index
    %10 = vector.load %arg2[%c0_4, %c0_5] : memref<16x128xf32, #tpu.memory_space<vmem>>, vector<16x128xf32>
    tpu.vector_store %arg2[%c0_4, %c0_5], %9 {strides = array<i32>} : memref<16x128xf32, #tpu.memory_space<vmem>>, vector<16x128xf32>,
    return
  }
  func.func @transform_0(%arg0: i32) -> (i32, i32) {
    %c0_i32 = arith.constant 0 : i32
    %c0_i32_0 = arith.constant 0 : i32
    return %arg0, %c0_i32 : i32, i32
  }
  func.func @transform_1(%arg0: i32) -> (i32, i32) {
    %c0_i32 = arith.constant 0 : i32
    %c0_i32_0 = arith.constant 0 : i32
    return %arg0, %c0_i32 : i32, i32
  }
}

</mosaic_0001>

<llo_original>
// kernel: tpu_custom_call.1
$region0: #{tpu_custom_call.1}
  #allocation0 [shape = 'u32[]', space=smem, size = 0x4, offset = 0x4, fixed_abs, tag = 'smem constant byte address 0x4 - core index']
  #allocation1 [shape = 'u32[72,128]{1,0:T(1,128)}', space=vmem, size = 0x9000, scoped, tag = 'internal scratch']
  %s0 = inlined_call_operand.hbm [shape: f32[16,128], index: 0, kind: input, shape index: {}]
  %s1 = inlined_call_operand.hbm [shape: f32[16,128], index: 1, kind: output, shape index: {}]
  %s2 = sld [smem:[#allocation0]]
  $region18: #{tpu_custom_call.1} parent=0
    _
  %s4 = ssub.s32 1, %s2
  %s5 = scalar_select 0, %s4, %s2
  $region1: #{tpu_custom_call.1} parent=0
    #allocation2 [shape = 'u8[8192]{0}', space=vmem, size = 0x2000, scoped, tag = 'input window, operand 0, single buffered']
    #allocation3 [shape = 's32[1]{0}', space=sflag, size = 0x4, scoped, tag = 'scoped memory for tpu_custom_call.1']
    #allocation4 [shape = 's32[1]{0}', space=sflag, size = 0x4, scoped, tag = 'scoped memory for tpu_custom_call.1']
    #allocation5 [shape = 'u8[8192]{0}', space=vmem, size = 0x2000, scoped, tag = 'output window, operand 0, single buffered']
    %6 = vsyncpa [#allocation3], 0
    %7 = vsyncpa [#allocation4], 0
    // Predicated region
    $region2: #{tpu_custom_call.1} parent=1 // pred_check
      _
    $region3: #{tpu_custom_call.1} parent=1 // pred_check_branch
      %9 = sbr.rel (0) target = $region5
    $region4: #{tpu_custom_call.1} parent=1 // pred_region
      %11 = vsyncadd [#allocation3], 0
      %s12 = sshll.u32 %s0, 4
      %s13 = int_to_ptr.hbm [resolvable:$true] %s12
      %s14 = sshll.u32 [#allocation2], 4
      %s15 = int_to_ptr.vmem [resolvable:$true] %s14
      %20 = dma.hbm_to_vmem [thread:$0]  %s13, 256, %s15, [#allocation3], 128, 128, 8
    $region5: #{tpu_custom_call.1} parent=1 // pred_fallthru
      _
    // Predicated region
    $region6: #{tpu_custom_call.1} parent=1 // pred_check
      _
    $region7: #{tpu_custom_call.1} parent=1 // pred_check_branch
      %22 = sbr.rel (0) target = $region9
    $region8: #{tpu_custom_call.1} parent=1 // pred_region
      %24 = dma.done [#allocation3], 256
    $region9: #{tpu_custom_call.1} parent=1 // pred_fallthru
      _
    %v25 = vld [vmem:[#allocation2] sm:$0xff]
    %v26 = vld [vmem:[#allocation2 + $0x8] sm:$0xff]
    %v27 = vmax.f32 %v25, 0.0
    %v28 = vmax.f32 %v26, 0.0
    %v29 = vmin.f32 %v27, 1.0
    %v30 = vmin.f32 %v28, 1.0
    %v31 = vmul.f32 %v29, 3.0
    %v32 = vmul.f32 %v30, 3.0
    %v33 = vround.ne.pseudo %v31
    %v34 = vround.ne.pseudo %v32
    %v35 = vrcp.pop 3.0
    %v36 = vmul.f32 3.0, %v35
    %v37 = vsub.f32 1.0, %v36
    %v38 = vmul.f32 %v35, %v37
    %v39 = vadd.f32 %v35, %v38
    %vm40 = vweird.f32 %v35
    %v41 = vsel %vm40, %v35, %v39
    %v42 = vmul.f32 %v33, %v41
    %v43 = vmul.f32 %v34, %v41
    %44 = vst [vmem:[#allocation5] sm:$0xff] %v42
    %45 = vst [vmem:[#allocation5 + $0x8] sm:$0xff] %v43
    // Predicated region
    $region10: #{tpu_custom_call.1} parent=1 // pred_check
      _
    $region11: #{tpu_custom_call.1} parent=1 // pred_check_branch
      %47 = sbr.rel (0) target = $region13
    $region12: #{tpu_custom_call.1} parent=1 // pred_region
      %49 = vsyncadd [#allocation4], 0
      %s50 = sshll.u32 [#allocation5], 4
      %s51 = int_to_ptr.vmem [resolvable:$true] %s50
      %s52 = sshll.u32 %s1, 4
      %s53 = int_to_ptr.hbm [resolvable:$true] %s52
      %58 = dma.vmem_to_hbm [thread:$0]  %s51, 256, %s53, [#allocation4], 128, 128, 8
    $region13: #{tpu_custom_call.1} parent=1 // pred_fallthru
      _
    // Predicated region
    $region14: #{tpu_custom_call.1} parent=1 // pred_check
      _
    $region15: #{tpu_custom_call.1} parent=1 // pred_check_branch
      %60 = sbr.rel (0) target = $region17
    $region16: #{tpu_custom_call.1} parent=1 // pred_region
      %62 = dma.done [#allocation4], 256
    $region17: #{tpu_custom_call.1} parent=1 // pred_fallthru
      _
    %63 = vsyncpa [#allocation3], 1
    %64 = vsyncpa [#allocation4], 1

</llo_original>
